<compile_context>
chip_gen: v5e
topology: v5e:2x2
jax: 0.10.0
libtpu: 0.0.40
codegen_flags: <defaults>
</compile_context>

<pallas_src>
import functools

import jax
import jax.numpy as jnp
from jax.experimental import pallas as pl
from jax.experimental.pallas import tpu as pltpu


def _kd_block_kernel(temp_ref, ys_ref, yt_ref, out_ref, *,
                     total_rows, block_b, num_blocks):
    """Partial sum of KL(p_t || p_s) over one batch tile of scaled logits.

    temp_ref: SMEM (1,)  f32   -- temperature T
    ys_ref  : VMEM (TB, C)     -- student logits tile
    yt_ref  : VMEM (TB, C)     -- teacher logits tile
    out_ref : VMEM (8, 128) f32-- partial sum at [0, 0], zeros elsewhere
    """
    inv_t = 1.0 / temp_ref[0]

    ys_raw = ys_ref[...]
    yt_raw = yt_ref[...]

    # Row maxes on the raw dtype (bf16 stays packed on v6e/v7x VPU); max
    # commutes with the positive 1/T scale, so this is exact.
    ys_max = jnp.max(ys_raw, axis=1, keepdims=True).astype(jnp.float32)
    yt_max = jnp.max(yt_raw, axis=1, keepdims=True).astype(jnp.float32)

    ys_shift = (ys_raw.astype(jnp.float32) - ys_max) * inv_t
    yt_shift = (yt_raw.astype(jnp.float32) - yt_max) * inv_t

    exp_s = jnp.exp(ys_shift)
    exp_t = jnp.exp(yt_shift)
    sum_s = jnp.sum(exp_s, axis=1, keepdims=True)                      # (TB, 1)
    sum_t = jnp.sum(exp_t, axis=1, keepdims=True)                      # (TB, 1)
    cross = jnp.sum(exp_t * (yt_shift - ys_shift), axis=1, keepdims=True)

    # Folded per-row KL (uses sum_c p_t == 1):
    #   sum_c p_t*(log p_t - log p_s) = cross/sum_t + log(sum_s) - log(sum_t)
    row_kl = cross / sum_t + jnp.log(sum_s) - jnp.log(sum_t)           # (TB, 1)

    # Write one f32 per block at [0, 0] of a native (8, 128) tile -> full
    # unmasked store; wrapper just sums the whole output array.
    sub = jax.lax.broadcasted_iota(jnp.int32, (8, 128), 0)
    lane = jax.lax.broadcasted_iota(jnp.int32, (8, 128), 1)
    first = (sub == 0) & (lane == 0)

    def _write(vals):
        out_ref[...] = jnp.where(first, jnp.sum(vals), 0.0)

    if total_rows % block_b != 0:
        # Only the last block is ragged: gate the mask so full tiles pay nothing.
        rows_in_last = total_rows - (num_blocks - 1) * block_b
        is_last = pl.program_id(0) == num_blocks - 1

        @pl.when(is_last)
        def _():
            # Mask BEFORE the reduction: exp() of block padding may be inf/NaN
            # and must not reach the partial sum.
            row_ids = jax.lax.broadcasted_iota(jnp.int32, row_kl.shape, 0)
            _write(jnp.where(row_ids < rows_in_last, row_kl, 0.0))

        @pl.when(jnp.logical_not(is_last))
        def _():
            _write(row_kl)
    else:
        _write(row_kl)


def _vmem_capacity_bytes():
    try:
        return int(pltpu.get_tpu_info().vmem_capacity_bytes)
    except Exception:
        return 64 * 1024 * 1024   # conservative default (v7x has the smallest VMEM)


def _round_up(x, m):
    return ((x + m - 1) // m) * m


def _choose_block_b(batch, n_classes, s_item, t_item, vmem_cap):
    # Align to 16 rows whenever either input is sub-32-bit (bf16 sublane packing).
    align = 16 if min(s_item, t_item) <= 2 else 8
    # Per-row VMEM cost: 2 double-buffered copies of each input row plus ~4
    # tile-sized f32 temporaries (casts / shifts / exps) Mosaic materializes.
    bytes_per_row = n_classes * (2 * (s_item + t_item) + 4 * 4)
    budget = int(0.45 * vmem_cap)
    tb = budget // max(1, bytes_per_row)
    tb = max(align, (tb // align) * align)
    tb = min(tb, 4096)
    if tb >= batch:
        # Whole batch fits one tile: split into >=2 grid steps when alignment
        # allows, so both v7x TensorCores get work (no-op on 1-TC v5e/v6e).
        if batch >= 2 * align:
            tb = _round_up(-(-batch // 2), align)
            if tb >= batch:
                tb = batch
        else:
            tb = batch
    return tb


def distill_kl_ctkd(y_s, y_t, temp, *, block_b=None):
    """Pallas implementation of DistillKL_CTKD.forward(y_s, y_t, temp)."""
    assert y_s.ndim == 2 and y_s.shape == y_t.shape
    batch, n_classes = y_s.shape
    s_item = jnp.dtype(y_s.dtype).itemsize
    t_item = jnp.dtype(y_t.dtype).itemsize
    vmem_cap = _vmem_capacity_bytes()

    if block_b is None:
        block_b = _choose_block_b(batch, n_classes, s_item, t_item, vmem_cap)
    block_b = int(min(block_b, batch))
    num_blocks = int(pl.cdiv(batch, block_b))

    temp_arr = jnp.reshape(jnp.asarray(temp, dtype=jnp.float32), (1,))

    # VMEM: 2 pipeline buffers per input + ~4 tile-sized f32 temporaries
    # + double-buffered (8,128) output + slack.
    vmem_need = (2 * block_b * n_classes * (s_item + t_item)
                 + 4 * block_b * n_classes * 4
                 + 2 * 8 * 128 * 4 + (1 << 20))
    vmem_limit = int(min(max(vmem_need, 32 * 1024 * 1024),
                         max(int(0.9 * vmem_cap), vmem_need)))

    partial = pl.pallas_call(
        functools.partial(_kd_block_kernel, total_rows=batch,
                          block_b=block_b, num_blocks=num_blocks),
        out_shape=jax.ShapeDtypeStruct((num_blocks * 8, 128), jnp.float32),
        grid=(num_blocks,),
        in_specs=[
            pl.BlockSpec(memory_space=pltpu.SMEM),                   # temperature
            pl.BlockSpec((block_b, n_classes), lambda i: (i, 0)),    # student logits
            pl.BlockSpec((block_b, n_classes), lambda i: (i, 0)),    # teacher logits
        ],
        out_specs=pl.BlockSpec((8, 128), lambda i: (i, 0)),
        compiler_params=pltpu.CompilerParams(
            dimension_semantics=("parallel",),
            vmem_limit_bytes=vmem_limit,
        ),
        cost_estimate=pl.CostEstimate(
            flops=int(12 * batch * n_classes),
            transcendentals=int(2 * batch * n_classes + 2 * batch),
            bytes_accessed=int(batch * n_classes * (s_item + t_item)
                               + num_blocks * 8 * 128 * 4 + 4),
        ),
    )(temp_arr, y_s, y_t)

    t = jnp.asarray(temp, jnp.float32)
    return jnp.sum(partial) * (t * t) / batch


def _reference(y_s, y_t, temp):
    t = jnp.asarray(temp, jnp.float32)
    ys = y_s.astype(jnp.float32) / t
    yt = y_t.astype(jnp.float32) / t
    log_p_s = jax.nn.log_softmax(ys, axis=1)
    p_t = jax.nn.softmax(yt, axis=1)
    log_p_t = jax.nn.log_softmax(yt, axis=1)
    return jnp.sum(p_t * (log_p_t - log_p_s)) / y_s.shape[0] * t * t


if __name__ == "__main__":
    key = jax.random.PRNGKey(0)
    k1, k2, k3, k4, k5, k6 = jax.random.split(key, 6)
    temp = jnp.asarray(4.0, dtype=jnp.float32)

    # Case 1: tiny single-tile problem (batch=2, classes=32).
    b1, c1 = 2, 32
    ys1 = jax.random.normal(k1, (b1, c1), dtype=jnp.float32)
    yt1 = jax.random.normal(k2, (b1, c1), dtype=jnp.float32)
    loss1 = distill_kl_ctkd(ys1, yt1, temp)
    jax.block_until_ready(loss1)
    ref1 = _reference(ys1, yt1, temp)
    assert jnp.allclose(loss1, ref1, rtol=1e-5, atol=2e-5), (loss1, ref1)

    # Case 2: explicit block_b with a ragged last tile (batch=20 -> blocks 8/8/4).
    b2, c2 = 20, 128
    ys2 = jax.random.normal(k3, (b2, c2), dtype=jnp.float32)
    yt2 = jax.random.normal(k4, (b2, c2), dtype=jnp.float32)
    loss2 = distill_kl_ctkd(ys2, yt2, temp, block_b=8)
    jax.block_until_ready(loss2)
    ref2 = _reference(ys2, yt2, temp)
    assert jnp.allclose(loss2, ref2, rtol=1e-5, atol=2e-5), (loss2, ref2)

    # Case 3: bf16 logits, auto block chooser splits into 2 blocks (megacore path).
    b3, c3 = 64, 160
    ys3 = jax.random.normal(k5, (b3, c3), dtype=jnp.float32).astype(jnp.bfloat16)
    yt3 = jax.random.normal(k6, (b3, c3), dtype=jnp.float32).astype(jnp.bfloat16)
    loss3 = distill_kl_ctkd(ys3, yt3, temp)
    jax.block_until_ready(loss3)
    ref3 = _reference(ys3, yt3, temp)
    assert jnp.allclose(loss3, ref3, rtol=1e-4, atol=2e-5), (loss3, ref3)

    print("KERNEL_OK")
</pallas_src>

<mosaic_0001>
module attributes {stable_mosaic.version = 11 : i64} {
  func.func @_kd_block_kernel(%arg0: i32, %arg1: memref<1xf32, #tpu.memory_space<smem>>, %arg2: memref<2x32xf32, #tpu.memory_space<vmem>>, %arg3: memref<2x32xf32, #tpu.memory_space<vmem>>, %arg4: memref<8x128xf32, #tpu.memory_space<vmem>>) attributes {dimension_semantics = [#tpu.dimension_semantics<parallel>], iteration_bounds = array<i64: 1>, scalar_prefetch = 0 : i64, scratch_operands = 0 : i64, tpu.core_type = #tpu.core_type<tc>, window_params = [{transform_indices = @transform_0, window_bounds = array<i64: 1>}, {transform_indices = @transform_1, window_bounds = array<i64: 2, 32>}, {transform_indices = @transform_2, window_bounds = array<i64: 2, 32>}, {transform_indices = @transform_3, window_bounds = array<i64: 8, 128>}]} {
    %c0 = arith.constant 0 : index
    %0 = memref.load %arg1[%c0] : memref<1xf32, #tpu.memory_space<smem>>
    %cst = arith.constant 1.000000e+00 : f32
    %1 = arith.divf %cst, %0 : f32
    %c0_0 = arith.constant 0 : index
    %c0_1 = arith.constant 0 : index
    %2 = vector.load %arg2[%c0_0, %c0_1] : memref<2x32xf32, #tpu.memory_space<vmem>>, vector<2x32xf32>
    %c0_2 = arith.constant 0 : index
    %c0_3 = arith.constant 0 : index
    %3 = vector.load %arg3[%c0_2, %c0_3] : memref<2x32xf32, #tpu.memory_space<vmem>>, vector<2x32xf32>
    %cst_4 = arith.constant dense<0xFF800000> : vector<2xf32>
    %4 = vector.multi_reduction <maximumf>, %2, %cst_4 [1] : vector<2x32xf32> to vector<2xf32>
    %5 = vector.shape_cast %4 : vector<2xf32> to vector<2x1xf32>
    %cst_5 = arith.constant dense<0xFF800000> : vector<2xf32>
    %6 = vector.multi_reduction <maximumf>, %3, %cst_5 [1] : vector<2x32xf32> to vector<2xf32>
    %7 = vector.shape_cast %6 : vector<2xf32> to vector<2x1xf32>
    %8 = vector.broadcast %5 : vector<2x1xf32> to vector<2x32xf32>
    %9 = arith.subf %2, %8 : vector<2x32xf32>
    %10 = vector.broadcast %1 : f32 to vector<2x32xf32>
    %11 = arith.mulf %9, %10 : vector<2x32xf32>
    %12 = vector.broadcast %7 : vector<2x1xf32> to vector<2x32xf32>
    %13 = arith.subf %3, %12 : vector<2x32xf32>
    %14 = vector.broadcast %1 : f32 to vector<2x32xf32>
    %15 = arith.mulf %13, %14 : vector<2x32xf32>
    %16 = math.exp %11 : vector<2x32xf32>
    %17 = math.exp %15 : vector<2x32xf32>
    %cst_6 = arith.constant dense<0.000000e+00> : vector<2xf32>
    %18 = vector.multi_reduction <add>, %16, %cst_6 [1] : vector<2x32xf32> to vector<2xf32>
    %19 = vector.shape_cast %18 : vector<2xf32> to vector<2x1xf32>
    %cst_7 = arith.constant dense<0.000000e+00> : vector<2xf32>
    %20 = vector.multi_reduction <add>, %17, %cst_7 [1] : vector<2x32xf32> to vector<2xf32>
    %21 = vector.shape_cast %20 : vector<2xf32> to vector<2x1xf32>
    %22 = arith.subf %15, %11 : vector<2x32xf32>
    %23 = arith.mulf %17, %22 : vector<2x32xf32>
    %cst_8 = arith.constant dense<0.000000e+00> : vector<2xf32>
    %24 = vector.multi_reduction <add>, %23, %cst_8 [1] : vector<2x32xf32> to vector<2xf32>
    %25 = vector.shape_cast %24 : vector<2xf32> to vector<2x1xf32>
    %26 = arith.divf %25, %21 : vector<2x1xf32>
    %27 = math.log %19 : vector<2x1xf32>
    %28 = arith.addf %26, %27 : vector<2x1xf32>
    %29 = math.log %21 : vector<2x1xf32>
    %30 = arith.subf %28, %29 : vector<2x1xf32>
    %31 = tpu.iota {dimensions = array<i32: 0>} : vector<8x128xi32>
    %32 = tpu.iota {dimensions = array<i32: 1>} : vector<8x128xi32>
    %c0_i32 = arith.constant 0 : i32
    %33 = vector.broadcast %c0_i32 : i32 to vector<8x128xi32>
    %34 = arith.cmpi eq, %31, %33 : vector<8x128xi32>
    %c0_i32_9 = arith.constant 0 : i32
    %35 = vector.broadcast %c0_i32_9 : i32 to vector<8x128xi32>
    %36 = arith.cmpi eq, %32, %35 : vector<8x128xi32>
    %37 = arith.andi %34, %36 : vector<8x128xi1>
    %38 = vector.shape_cast %30 : vector<2x1xf32> to vector<1x2x1xf32>
    %cst_10 = arith.constant dense<0.000000e+00> : vector<1xf32>
    %39 = vector.multi_reduction <add>, %38, %cst_10 [1, 2] : vector<1x2x1xf32> to vector<1xf32>
    %40 = vector.shape_cast %39 : vector<1xf32> to vector<1x1x1xf32>
    %41 = vector.extract %40[0, 0, 0] : f32 from vector<1x1x1xf32>
    %cst_11 = arith.constant 0.000000e+00 : f32
    %42 = vector.broadcast %41 : f32 to vector<8x128xf32>
    %43 = vector.broadcast %cst_11 : f32 to vector<8x128xf32>
    %44 = arith.select %37, %42, %43 : vector<8x128xi1>, vector<8x128xf32>
    %c0_12 = arith.constant 0 : index
    %c0_13 = arith.constant 0 : index
    %45 = vector.load %arg4[%c0_12, %c0_13] : memref<8x128xf32, #tpu.memory_space<vmem>>, vector<8x128xf32>
    tpu.vector_store %arg4[%c0_12, %c0_13], %44 {strides = array<i32>} : memref<8x128xf32, #tpu.memory_space<vmem>>, vector<8x128xf32>,
    return
  }
  func.func @transform_0(%arg0: i32) -> i32 {
    %c0_i32 = arith.constant 0 : i32
    %c0_i32_0 = arith.constant 0 : i32
    return %c0_i32 : i32
  }
  func.func @transform_1(%arg0: i32) -> (i32, i32) {
    %c0_i32 = arith.constant 0 : i32
    %c0_i32_0 = arith.constant 0 : i32
    return %arg0, %c0_i32 : i32, i32
  }
  func.func @transform_2(%arg0: i32) -> (i32, i32) {
    %c0_i32 = arith.constant 0 : i32
    %c0_i32_0 = arith.constant 0 : i32
    return %arg0, %c0_i32 : i32, i32
  }
  func.func @transform_3(%arg0: i32) -> (i32, i32) {
    %c0_i32 = arith.constant 0 : i32
    %c0_i32_0 = arith.constant 0 : i32
    return %arg0, %c0_i32 : i32, i32
  }
}

</mosaic_0001>

<llo_original>
// kernel: tpu_custom_call.1
$region0: #{tpu_custom_call.1}
  #allocation0 [shape = 'u32[]', space=smem, size = 0x4, offset = 0x4, fixed_abs, tag = 'smem constant byte address 0x4 - core index']
  #allocation1 [shape = 'u32[72,128]{1,0:T(1,128)}', space=vmem, size = 0x9000, scoped, tag = 'internal scratch']
  #allocation2 [shape = 'f32[1]{0:T(128)S(6)}', space=smem, size = 0x200, scoped, tag = 'scoped memory for tpu_custom_call.1']
  %s0 = inlined_call_operand.<no memory space> [shape: f32[1], index: 0, kind: input, shape index: {}]
  %s1 = inlined_call_operand.vmem [shape: f32[2,32], index: 1, kind: input, shape index: {}]
  %s2 = inlined_call_operand.hbm [shape: f32[2,32], index: 2, kind: input, shape index: {}]
  %s3 = inlined_call_operand.hbm [shape: f32[8,128], index: 3, kind: output, shape index: {}]
  %s4 = sld [smem:[#allocation0]]
  $region26: #{tpu_custom_call.1} parent=0
    _
  %s6 = ssub.s32 1, %s4
  %s7 = scalar_select 0, %s6, %s4
  %8 = sst [smem:[#allocation2]] %s0
  $region1: #{tpu_custom_call.1} parent=0
    #allocation3 [shape = 'u8[1024]{0}', space=vmem, size = 0x400, scoped, tag = 'input window, operand 2, single buffered']
    #allocation4 [shape = 's32[1]{0}', space=sflag, size = 0x4, scoped, tag = 'scoped memory for tpu_custom_call.1']
    #allocation5 [shape = 's32[1]{0}', space=sflag, size = 0x4, scoped, tag = 'scoped memory for tpu_custom_call.1']
    #allocation6 [shape = 'u8[4096]{0}', space=vmem, size = 0x1000, scoped, tag = 'output window, operand 0, single buffered']
    %9 = vsyncpa [#allocation4], 0
    %10 = vsyncpa [#allocation5], 0
    // Predicated region
    $region2: #{tpu_custom_call.1} parent=1 // pred_check
      _
    $region3: #{tpu_custom_call.1} parent=1 // pred_check_branch
      %12 = sbr.rel (0) target = $region5
    $region4: #{tpu_custom_call.1} parent=1 // pred_region
      _
    $region5: #{tpu_custom_call.1} parent=1 // pred_fallthru
      _
    // Predicated region
    $region6: #{tpu_custom_call.1} parent=1 // pred_check
      _
    $region7: #{tpu_custom_call.1} parent=1 // pred_check_branch
      %14 = sbr.rel (0) target = $region9
    $region8: #{tpu_custom_call.1} parent=1 // pred_region
      _
    $region9: #{tpu_custom_call.1} parent=1 // pred_fallthru
      _
    // Predicated region
    $region10: #{tpu_custom_call.1} parent=1 // pred_check
      _
    $region11: #{tpu_custom_call.1} parent=1 // pred_check_branch
      %16 = sbr.rel (0) target = $region13
    $region12: #{tpu_custom_call.1} parent=1 // pred_region
      %18 = vsyncadd [#allocation4], 0
      %s20 = sshll.u32 %s2, 4
      %s21 = int_to_ptr.hbm [resolvable:$true] %s20
      %s22 = sshll.u32 [#allocation3], 4
      %s23 = int_to_ptr.vmem [resolvable:$true] %s22
      %25 = dma.hbm_to_vmem [thread:$0]  %s21, 32, %s23, [#allocation4]
    $region13: #{tpu_custom_call.1} parent=1 // pred_fallthru
      _
    // Predicated region
    $region14: #{tpu_custom_call.1} parent=1 // pred_check
      _
    $region15: #{tpu_custom_call.1} parent=1 // pred_check_branch
      %27 = sbr.rel (0) target = $region17
    $region16: #{tpu_custom_call.1} parent=1 // pred_region
      %29 = dma.done [#allocation4], 32
    $region17: #{tpu_custom_call.1} parent=1 // pred_fallthru
      _
    %s30 = sld [smem:[#allocation2]]
    %v31 = vstv %s30
    %v32 = vrcp.pop %v31
    %v33 = vmul.f32 %v31, %v32
    %v34 = vsub.f32 1.0, %v33
    %v35 = vmul.f32 %v32, %v34
    %v36 = vadd.f32 %v32, %v35
    %vm37 = vweird.f32 %v31
    %vm38 = vweird.f32 %v32
    %vm39 = vmor %vm37, %vm38
    %v40 = vsel %vm39, %v32, %v36
    %v41 = vand.u32 2147483647, %v31
    %vm42 = vcmp.eq.f32.partialorder %v41, 8.507059e+37
    %v43 = vand.u32 %v31, 2147483648
    %v44 = vor.u32 1.1754944e-38, %v43
    %v45 = vsel %vm42, %v44, %v40
    %s46 = vtos %v45
    %v47 = vld [vmem:[%s1] sm:$0x3]
    %v48 = vld [vmem:[#allocation3] sm:$0x3]
    %vm49 = vcmask 254976
    %v50 = vsel %vm49, %v47, -inf
    %51 = vmax.xlane.f32.xlu0 %v50
    %v52 = vpop.xlane.xlu0 %51
    %v53 = vsel %vm49, %v48, -inf
    %54 = vmax.xlane.f32.xlu0 %v53
    %v55 = vpop.xlane.xlu0 %54
    %v56 = vsub.f32 %v47, %v52
    %v57 = vstv %s46
    %v58 = vmul.f32 %v56, %v57
    %v59 = vsub.f32 %v48, %v55
    %v60 = vmul.f32 %v59, %v57
    %v61 = vmul.f32 %v58, 1.442695
    %v62 = vpow.pop %v61
    %v63 = vmul.f32 %v60, 1.442695
    %v64 = vpow.pop %v63
    %v65 = vsel %vm49, %v62, 0.0
    %66 = vadd.xlane.f32.xlu0 %v65
    %v67 = vpop.xlane.xlu0 %66
    %v68 = vsel %vm49, %v64, 0.0
    %69 = vadd.xlane.f32.xlu0 %v68
    %v70 = vpop.xlane.xlu0 %69
    %v71 = vsub.f32 %v60, %v58
    %v72 = vmul.f32 %v64, %v71
    %v73 = vsel %vm49, %v72, 0.0
    %74 = vadd.xlane.f32.xlu0 %v73
    %v75 = vpop.xlane.xlu0 %74
    %v76 = vrcp.pop %v70
    %v77 = vmul.f32 %v70, %v76
    %v78 = vsub.f32 1.0, %v77
    %v79 = vmul.f32 %v76, %v78
    %v80 = vadd.f32 %v76, %v79
    %vm81 = vweird.f32 %v70
    %vm82 = vweird.f32 %v76
    %vm83 = vmor %vm81, %vm82
    %v84 = vsel %vm83, %v76, %v80
    %v85 = vand.u32 2147483647, %v70
    %vm86 = vcmp.eq.f32.partialorder %v85, 8.507059e+37
    %v87 = vand.u32 %v70, 2147483648
    %v88 = vor.u32 1.1754944e-38, %v87
    %v89 = vsel %vm86, %v88, %v84
    %v90 = vmul.f32 %v75, %v89
    %v91 = vlog2.pop %v67
    %v92 = vmul.f32 %v91, 0.6931472
    %v93 = vadd.f32 %v90, %v92
    %v94 = vlog2.pop %v70
    %v95 = vmul.f32 %v94, 0.6931472
    %v96 = vsub.f32 %v93, %v95
    %v97 = vlaneseq
    %v98 = vshrl.u32 %v97, 7
    %v99 = vlaneseq
    %v100 = vand.u32 %v99, 127
    %vm101 = vcmp.eq.s32.totalorder %v98, 0
    %vm102 = vcmp.eq.s32.totalorder %v100, 0
    %vm103 = vmand %vm101, %vm102
    %vm104 = vcmask 1024
    %v105 = vsel %vm104, %v96, 0.0
    %106 = vadd.xlane.f32.xlu0 %v105
    %v107 = vpop.xlane.xlu0 %106
    %v108 = vrot.slane %v107, 4
    %v109 = vadd.f32 %v107, %v108
    %v110 = vrot.slane %v109, 2
    %v111 = vadd.f32 %v109, %v110
    %v112 = vrot.slane %v111, 1
    %v113 = vadd.f32 %v111, %v112
    %s114 = vtos %v113
    %v115 = vstv %s114
    %v116 = vsel %vm103, %v115, 0.0
    %117 = vst [vmem:[#allocation6] sm:$0xff] %v116
    // Predicated region
    $region18: #{tpu_custom_call.1} parent=1 // pred_check
      _
    $region19: #{tpu_custom_call.1} parent=1 // pred_check_branch
      %119 = sbr.rel (0) target = $region21
    $region20: #{tpu_custom_call.1} parent=1 // pred_region
      %121 = vsyncadd [#allocation5], 0
      %s123 = sshll.u32 [#allocation6], 4
      %s124 = int_to_ptr.vmem [resolvable:$true] %s123
      %s125 = sshll.u32 %s3, 4
      %s126 = int_to_ptr.hbm [resolvable:$true] %s125
      %128 = dma.vmem_to_hbm [thread:$0]  %s124, 128, %s126, [#allocation5]
    $region21: #{tpu_custom_call.1} parent=1 // pred_fallthru
      _
    // Predicated region
    $region22: #{tpu_custom_call.1} parent=1 // pred_check
      _
    $region23: #{tpu_custom_call.1} parent=1 // pred_check_branch
      %130 = sbr.rel (0) target = $region25
    $region24: #{tpu_custom_call.1} parent=1 // pred_region
      %132 = dma.done [#allocation5], 128
    $region25: #{tpu_custom_call.1} parent=1 // pred_fallthru
      _
    %133 = vsyncpa [#allocation4], 1
    %134 = vsyncpa [#allocation5], 1

</llo_original>
